<compile_context>
chip_gen: v5e
topology: v5e:2x2
jax: 0.10.0
libtpu: 0.0.40
codegen_flags: <defaults>
</compile_context>

<pallas_src>
import functools

import jax
import jax.numpy as jnp
from jax import lax
from jax.experimental import pallas as pl
from jax.experimental.pallas import tpu as pltpu


_LANE = 128            # TPU lane width
_BF16_SUBLANE = 16     # bf16 sublane packing (row-tile granularity)
_UNROLL_MAX_LAYERS = 4 # static unroll threshold for layers inside a block


def _round_up(x, m):
    return ((x + m - 1) // m) * m


def _pick_tb(batch):
    # Small batch -> a single grid step (the grid is a serial loop on a single
    # TensorCore, so splitting is pure per-step overhead).  Large batch ->
    # 256-row tiles: fills the MXU M dim on the 256-wide v6e/v7x MXU, amortizes
    # per-step pipeline overhead, and keeps (TB,128) activation vreg pressure
    # below the spill threshold.
    if batch <= 256:
        return _round_up(max(batch, _BF16_SUBLANE), _BF16_SUBLANE)
    return 256


def _resdnn_kernel(x_ref, w1_ref, b1_ref, wblk_ref, sblk_ref, w2_ref, b2_ref,
                   o_ref, res_ref, *, n_levels, n_layers_per_block):
    """Whole ResDNN forward for one (TB, in_pad) batch tile.

    Activations stay in bf16 between layers; every matmul accumulates in f32 on
    the MXU.  BN (eval) + Linear bias are pre-folded so the per-layer epilogue
    is a single add + max.
    """
    # fc1 + ReLU
    h = jnp.dot(x_ref[...], w1_ref[...], preferred_element_type=jnp.float32)
    h = jnp.maximum(h + b1_ref[...], 0.0).astype(jnp.bfloat16)

    def layer(idx, hh):
        y = jnp.dot(hh, wblk_ref[idx], preferred_element_type=jnp.float32)
        return jnp.maximum(y + sblk_ref[idx], 0.0).astype(jnp.bfloat16)

    for lvl in range(n_levels):                    # levels are few -> unroll
        res_ref[...] = h                           # park residual in VMEM scratch
        if n_layers_per_block <= _UNROLL_MAX_LAYERS:
            for l in range(n_layers_per_block):
                h = layer(lvl * n_layers_per_block + l, h)
        else:
            # Deep blocks: bound code size; dynamic first-axis indexing of the
            # stacked weight refs is supported.
            h = lax.fori_loop(
                0, n_layers_per_block,
                lambda l, hh: layer(lvl * n_layers_per_block + l, hh), h)
        h = h + res_ref[...]                       # residual add (bf16)

    # fc2 (output channels are zero-padded to a lane-dense 128 in the wrapper)
    out = jnp.dot(h, w2_ref[...], preferred_element_type=jnp.float32)
    o_ref[...] = (out + b2_ref[...]).astype(o_ref.dtype)


def resdnn_forward(x, w1, b1, w_blocks, b_blocks, scale_blocks, shift_blocks,
                   w2, b2, *, n_levels, n_layers_per_block):
    """x: (B, ...) flattened to (B, in_size).  Weights are in (in, out) layout
    (== PyTorch weight.T).  w/b/scale/shift_blocks are stacked over the
    n_levels * n_layers_per_block hidden Linear+BN layers."""
    B = x.shape[0]
    x2 = x.reshape(B, -1).astype(jnp.float32)
    in_size = x2.shape[1]
    n_neurons = w1.shape[1]
    out_size = w2.shape[1]
    L = n_levels * n_layers_per_block
    assert w_blocks.shape == (L, n_neurons, n_neurons)
    assert n_neurons % _LANE == 0, "n_neurons must be a multiple of 128"

    # --- Fold BatchNorm1d (eval) + Linear bias into weights / a single shift.
    w_eff = (w_blocks.astype(jnp.float32)
             * scale_blocks.astype(jnp.float32)[:, None, :])
    s_eff = (b_blocks.astype(jnp.float32) * scale_blocks.astype(jnp.float32)
             + shift_blocks.astype(jnp.float32)).reshape(L, 1, n_neurons)

    # --- Lane-dense padding of feature / output dims (multiples of 128).
    in_pad = _round_up(in_size, _LANE)
    out_pad = _round_up(out_size, _LANE)
    w1f = w1.astype(jnp.float32)
    if in_pad != in_size:
        x2 = jnp.pad(x2, ((0, 0), (0, in_pad - in_size)))
        w1f = jnp.pad(w1f, ((0, in_pad - in_size), (0, 0)))
    w2p = jnp.pad(w2.astype(jnp.float32), ((0, 0), (0, out_pad - out_size)))
    b2p = jnp.pad(b2.astype(jnp.float32).reshape(1, -1),
                  ((0, 0), (0, out_pad - out_size)))

    # --- Batch tiling: big padded tiles; discard padded rows afterwards.
    TB = _pick_tb(B)
    B_pad = _round_up(B, TB)
    if B_pad != B:
        x2 = jnp.pad(x2, ((0, B_pad - B), (0, 0)))
    grid = (B_pad // TB,)

    # --- bf16 MXU inputs (f32 accumulation in-kernel); biases/shifts stay f32.
    x_bf = x2.astype(jnp.bfloat16)
    w1_bf = w1f.astype(jnp.bfloat16)
    w_eff_bf = w_eff.astype(jnp.bfloat16)
    w2_bf = w2p.astype(jnp.bfloat16)
    b1r = b1.reshape(1, n_neurons).astype(jnp.float32)

    # --- VMEM budget: resident weights + double-buffered x/out tiles + scratch.
    weight_bytes = 2 * (in_pad * n_neurons + L * n_neurons * n_neurons
                        + n_neurons * out_pad) + 4 * (L + 2) * n_neurons
    stream_bytes = 2 * (TB * in_pad * 2) + 2 * (TB * out_pad * 4)
    scratch_bytes = TB * n_neurons * 2
    vmem_limit = int(min(max(2 * (weight_bytes + stream_bytes + scratch_bytes)
                             + (4 << 20), 32 << 20), 64 << 20))

    flops = 2 * B_pad * (in_pad * n_neurons + L * n_neurons * n_neurons
                         + n_neurons * out_pad)
    bytes_accessed = B_pad * in_pad * 2 + weight_bytes + B_pad * out_pad * 4

    kernel = functools.partial(_resdnn_kernel, n_levels=n_levels,
                               n_layers_per_block=n_layers_per_block)

    out = pl.pallas_call(
        kernel,
        out_shape=jax.ShapeDtypeStruct((B_pad, out_pad), jnp.float32),
        grid_spec=pltpu.PrefetchScalarGridSpec(
            num_scalar_prefetch=0,
            grid=grid,
            in_specs=[
                pl.BlockSpec((TB, in_pad), lambda i: (i, 0)),
                pl.BlockSpec((in_pad, n_neurons), lambda i: (0, 0)),
                pl.BlockSpec((1, n_neurons), lambda i: (0, 0)),
                pl.BlockSpec((L, n_neurons, n_neurons), lambda i: (0, 0, 0)),
                pl.BlockSpec((L, 1, n_neurons), lambda i: (0, 0, 0)),
                pl.BlockSpec((n_neurons, out_pad), lambda i: (0, 0)),
                pl.BlockSpec((1, out_pad), lambda i: (0, 0)),
            ],
            out_specs=pl.BlockSpec((TB, out_pad), lambda i: (i, 0)),
            scratch_shapes=[pltpu.VMEM((TB, n_neurons), jnp.bfloat16)],
        ),
        compiler_params=pltpu.CompilerParams(
            dimension_semantics=("parallel",),
            vmem_limit_bytes=vmem_limit),
        cost_estimate=pl.CostEstimate(flops=flops, transcendentals=0,
                                      bytes_accessed=bytes_accessed),
    )(x_bf, w1_bf, b1r, w_eff_bf, s_eff, w2_bf, b2p)

    return out[:B, :out_size]


def _reference_resdnn(x, w1, b1, w_blocks, b_blocks, gamma, beta, mean, var,
                      eps, w2, b2, *, n_levels, n_layers_per_block):
    """Pure-JAX f32 reference with unfolded BatchNorm (eval-mode) semantics."""
    B = x.shape[0]
    h = x.reshape(B, -1).astype(jnp.float32)
    h = jnp.maximum(h @ w1 + b1, 0.0)
    idx = 0
    for _ in range(n_levels):
        r = h
        for _ in range(n_layers_per_block):
            y = h @ w_blocks[idx] + b_blocks[idx]
            y = (y - mean[idx]) / jnp.sqrt(var[idx] + eps) * gamma[idx] + beta[idx]
            h = jnp.maximum(y, 0.0)
            idx += 1
        h = h + r
    return h @ w2 + b2


if __name__ == "__main__":
    # Small shapes: flatten(16, 4, 4, 8) -> (16, 128).
    B = 16
    in_shape = (B, 4, 4, 8)
    in_size = 4 * 4 * 8
    n_neurons = 128
    out_size = 8
    n_levels = 2
    n_layers_per_block = 2
    L = n_levels * n_layers_per_block
    eps = 1e-5

    key = jax.random.PRNGKey(0)
    ks = jax.random.split(key, 12)

    x = jax.random.normal(ks[0], in_shape, dtype=jnp.float32)

    # Linear weights in (in, out) layout (== PyTorch weight.T), with biases.
    w1 = 0.05 * jax.random.normal(ks[1], (in_size, n_neurons), dtype=jnp.float32)
    b1 = 0.05 * jax.random.normal(ks[2], (n_neurons,), dtype=jnp.float32)
    w_blocks = 0.05 * jax.random.normal(ks[3], (L, n_neurons, n_neurons),
                                        dtype=jnp.float32)
    b_blocks = 0.05 * jax.random.normal(ks[4], (L, n_neurons), dtype=jnp.float32)
    w2 = 0.05 * jax.random.normal(ks[5], (n_neurons, out_size), dtype=jnp.float32)
    b2 = 0.05 * jax.random.normal(ks[6], (out_size,), dtype=jnp.float32)

    # BatchNorm1d (eval mode) parameters for each hidden layer.
    gamma = 1.0 + 0.1 * jax.random.normal(ks[7], (L, n_neurons), dtype=jnp.float32)
    beta = 0.1 * jax.random.normal(ks[8], (L, n_neurons), dtype=jnp.float32)
    mean = 0.1 * jax.random.normal(ks[9], (L, n_neurons), dtype=jnp.float32)
    var = 0.9 + 0.1 * jnp.abs(jax.random.normal(ks[10], (L, n_neurons),
                                                dtype=jnp.float32))

    scale = gamma / jnp.sqrt(var + eps)
    shift = beta - mean * scale

    y = resdnn_forward(x, w1, b1, w_blocks, b_blocks, scale, shift, w2, b2,
                       n_levels=n_levels, n_layers_per_block=n_layers_per_block)
    y = jax.block_until_ready(y)

    y_ref = _reference_resdnn(x, w1, b1, w_blocks, b_blocks, gamma, beta, mean,
                              var, eps, w2, b2, n_levels=n_levels,
                              n_layers_per_block=n_layers_per_block)

    assert y.shape == (B, out_size), y.shape
    # bf16 MXU inputs (f32 accumulation) -> loosened tolerance vs f32 reference.
    assert jnp.allclose(y, y_ref, atol=3e-2, rtol=3e-2), "mismatch vs reference"

    print("KERNEL_OK")
</pallas_src>

<mosaic_0001>
module attributes {stable_mosaic.version = 11 : i64} {
  func.func @_resdnn_kernel(%arg0: i32, %arg1: memref<16x128xbf16, #tpu.memory_space<vmem>>, %arg2: memref<128x128xbf16, #tpu.memory_space<vmem>>, %arg3: memref<1x128xf32, #tpu.memory_space<vmem>>, %arg4: memref<4x128x128xbf16, #tpu.memory_space<vmem>>, %arg5: memref<4x1x128xf32, #tpu.memory_space<vmem>>, %arg6: memref<128x128xbf16, #tpu.memory_space<vmem>>, %arg7: memref<1x128xf32, #tpu.memory_space<vmem>>, %arg8: memref<16x128xf32, #tpu.memory_space<vmem>>, %arg9: memref<16x128xbf16, #tpu.memory_space<vmem>>) attributes {dimension_semantics = [#tpu.dimension_semantics<parallel>], iteration_bounds = array<i64: 1>, scalar_prefetch = 0 : i64, scratch_operands = 1 : i64, tpu.core_type = #tpu.core_type<tc>, window_params = [{transform_indices = @transform_0, window_bounds = array<i64: 16, 128>}, {pipeline_mode = #tpu.pipeline_mode<synchronous>, transform_indices = @transform_1, window_bounds = array<i64: 128, 128>}, {pipeline_mode = #tpu.pipeline_mode<synchronous>, transform_indices = @transform_2, window_bounds = array<i64: 1, 128>}, {pipeline_mode = #tpu.pipeline_mode<synchronous>, transform_indices = @transform_3, window_bounds = array<i64: 4, 128, 128>}, {pipeline_mode = #tpu.pipeline_mode<synchronous>, transform_indices = @transform_4, window_bounds = array<i64: 4, 1, 128>}, {pipeline_mode = #tpu.pipeline_mode<synchronous>, transform_indices = @transform_5, window_bounds = array<i64: 128, 128>}, {pipeline_mode = #tpu.pipeline_mode<synchronous>, transform_indices = @transform_6, window_bounds = array<i64: 1, 128>}, {transform_indices = @transform_7, window_bounds = array<i64: 16, 128>}]} {
    %c0 = arith.constant 0 : index
    %c0_0 = arith.constant 0 : index
    %0 = vector.load %arg1[%c0, %c0_0] : memref<16x128xbf16, #tpu.memory_space<vmem>>, vector<16x128xbf16>
    %c0_1 = arith.constant 0 : index
    %c0_2 = arith.constant 0 : index
    %1 = vector.load %arg2[%c0_1, %c0_2] : memref<128x128xbf16, #tpu.memory_space<vmem>>, vector<128x128xbf16>
    %cst = arith.constant dense<0.000000e+00> : vector<16x128xf32>
    %2 = tpu.matmul %0, %1, %cst {dimension_numbers = #tpu.dot_dimension_numbers<[1], [0], [0], [1], [0, 0, 1, 1], [], []>} : vector<16x128xbf16>, vector<128x128xbf16>, vector<16x128xf32> -> vector<16x128xf32>
    %c0_3 = arith.constant 0 : index
    %c0_4 = arith.constant 0 : index
    %3 = vector.load %arg3[%c0_3, %c0_4] : memref<1x128xf32, #tpu.memory_space<vmem>>, vector<1x128xf32>
    %4 = vector.broadcast %3 : vector<1x128xf32> to vector<16x128xf32>
    %5 = arith.addf %2, %4 : vector<16x128xf32>
    %cst_5 = arith.constant 0.000000e+00 : f32
    %6 = vector.broadcast %cst_5 : f32 to vector<16x128xf32>
    %7 = arith.maximumf %5, %6 : vector<16x128xf32>
    %8 = arith.truncf %7 : vector<16x128xf32> to vector<16x128xbf16>
    %c0_6 = arith.constant 0 : index
    %c0_7 = arith.constant 0 : index
    %9 = vector.load %arg9[%c0_6, %c0_7] : memref<16x128xbf16, #tpu.memory_space<vmem>>, vector<16x128xbf16>
    tpu.vector_store %arg9[%c0_6, %c0_7], %8 {strides = array<i32>} : memref<16x128xbf16, #tpu.memory_space<vmem>>, vector<16x128xbf16>,
    %c0_8 = arith.constant 0 : index
    %c0_9 = arith.constant 0 : index
    %c0_10 = arith.constant 0 : index
    %10 = vector.load %arg4[%c0_8, %c0_9, %c0_10] : memref<4x128x128xbf16, #tpu.memory_space<vmem>>, vector<1x128x128xbf16>
    %11 = vector.shape_cast %10 : vector<1x128x128xbf16> to vector<128x128xbf16>
    %cst_11 = arith.constant dense<0.000000e+00> : vector<16x128xf32>
    %12 = tpu.matmul %8, %11, %cst_11 {dimension_numbers = #tpu.dot_dimension_numbers<[1], [0], [0], [1], [0, 0, 1, 1], [], []>} : vector<16x128xbf16>, vector<128x128xbf16>, vector<16x128xf32> -> vector<16x128xf32>
    %c0_12 = arith.constant 0 : index
    %c0_13 = arith.constant 0 : index
    %c0_14 = arith.constant 0 : index
    %13 = vector.load %arg5[%c0_12, %c0_13, %c0_14] : memref<4x1x128xf32, #tpu.memory_space<vmem>>, vector<1x1x128xf32>
    %14 = vector.shape_cast %13 : vector<1x1x128xf32> to vector<1x128xf32>
    %15 = vector.broadcast %14 : vector<1x128xf32> to vector<16x128xf32>
    %16 = arith.addf %12, %15 : vector<16x128xf32>
    %cst_15 = arith.constant 0.000000e+00 : f32
    %17 = vector.broadcast %cst_15 : f32 to vector<16x128xf32>
    %18 = arith.maximumf %16, %17 : vector<16x128xf32>
    %19 = arith.truncf %18 : vector<16x128xf32> to vector<16x128xbf16>
    %c1 = arith.constant 1 : index
    %c0_16 = arith.constant 0 : index
    %c0_17 = arith.constant 0 : index
    %20 = vector.load %arg4[%c1, %c0_16, %c0_17] : memref<4x128x128xbf16, #tpu.memory_space<vmem>>, vector<1x128x128xbf16>
    %21 = vector.shape_cast %20 : vector<1x128x128xbf16> to vector<128x128xbf16>
    %cst_18 = arith.constant dense<0.000000e+00> : vector<16x128xf32>
    %22 = tpu.matmul %19, %21, %cst_18 {dimension_numbers = #tpu.dot_dimension_numbers<[1], [0], [0], [1], [0, 0, 1, 1], [], []>} : vector<16x128xbf16>, vector<128x128xbf16>, vector<16x128xf32> -> vector<16x128xf32>
    %c1_19 = arith.constant 1 : index
    %c0_20 = arith.constant 0 : index
    %c0_21 = arith.constant 0 : index
    %23 = vector.load %arg5[%c1_19, %c0_20, %c0_21] : memref<4x1x128xf32, #tpu.memory_space<vmem>>, vector<1x1x128xf32>
    %24 = vector.shape_cast %23 : vector<1x1x128xf32> to vector<1x128xf32>
    %25 = vector.broadcast %24 : vector<1x128xf32> to vector<16x128xf32>
    %26 = arith.addf %22, %25 : vector<16x128xf32>
    %cst_22 = arith.constant 0.000000e+00 : f32
    %27 = vector.broadcast %cst_22 : f32 to vector<16x128xf32>
    %28 = arith.maximumf %26, %27 : vector<16x128xf32>
    %29 = arith.truncf %28 : vector<16x128xf32> to vector<16x128xbf16>
    %c0_23 = arith.constant 0 : index
    %c0_24 = arith.constant 0 : index
    %30 = vector.load %arg9[%c0_23, %c0_24] : memref<16x128xbf16, #tpu.memory_space<vmem>>, vector<16x128xbf16>
    %31 = arith.addf %29, %30 : vector<16x128xbf16>
    %c0_25 = arith.constant 0 : index
    %c0_26 = arith.constant 0 : index
    %32 = vector.load %arg9[%c0_25, %c0_26] : memref<16x128xbf16, #tpu.memory_space<vmem>>, vector<16x128xbf16>
    tpu.vector_store %arg9[%c0_25, %c0_26], %31 {strides = array<i32>} : memref<16x128xbf16, #tpu.memory_space<vmem>>, vector<16x128xbf16>,
    %c2 = arith.constant 2 : index
    %c0_27 = arith.constant 0 : index
    %c0_28 = arith.constant 0 : index
    %33 = vector.load %arg4[%c2, %c0_27, %c0_28] : memref<4x128x128xbf16, #tpu.memory_space<vmem>>, vector<1x128x128xbf16>
    %34 = vector.shape_cast %33 : vector<1x128x128xbf16> to vector<128x128xbf16>
    %cst_29 = arith.constant dense<0.000000e+00> : vector<16x128xf32>
    %35 = tpu.matmul %31, %34, %cst_29 {dimension_numbers = #tpu.dot_dimension_numbers<[1], [0], [0], [1], [0, 0, 1, 1], [], []>} : vector<16x128xbf16>, vector<128x128xbf16>, vector<16x128xf32> -> vector<16x128xf32>
    %c2_30 = arith.constant 2 : index
    %c0_31 = arith.constant 0 : index
    %c0_32 = arith.constant 0 : index
    %36 = vector.load %arg5[%c2_30, %c0_31, %c0_32] : memref<4x1x128xf32, #tpu.memory_space<vmem>>, vector<1x1x128xf32>
    %37 = vector.shape_cast %36 : vector<1x1x128xf32> to vector<1x128xf32>
    %38 = vector.broadcast %37 : vector<1x128xf32> to vector<16x128xf32>
    %39 = arith.addf %35, %38 : vector<16x128xf32>
    %cst_33 = arith.constant 0.000000e+00 : f32
    %40 = vector.broadcast %cst_33 : f32 to vector<16x128xf32>
    %41 = arith.maximumf %39, %40 : vector<16x128xf32>
    %42 = arith.truncf %41 : vector<16x128xf32> to vector<16x128xbf16>
    %c3 = arith.constant 3 : index
    %c0_34 = arith.constant 0 : index
    %c0_35 = arith.constant 0 : index
    %43 = vector.load %arg4[%c3, %c0_34, %c0_35] : memref<4x128x128xbf16, #tpu.memory_space<vmem>>, vector<1x128x128xbf16>
    %44 = vector.shape_cast %43 : vector<1x128x128xbf16> to vector<128x128xbf16>
    %cst_36 = arith.constant dense<0.000000e+00> : vector<16x128xf32>
    %45 = tpu.matmul %42, %44, %cst_36 {dimension_numbers = #tpu.dot_dimension_numbers<[1], [0], [0], [1], [0, 0, 1, 1], [], []>} : vector<16x128xbf16>, vector<128x128xbf16>, vector<16x128xf32> -> vector<16x128xf32>
    %c3_37 = arith.constant 3 : index
    %c0_38 = arith.constant 0 : index
    %c0_39 = arith.constant 0 : index
    %46 = vector.load %arg5[%c3_37, %c0_38, %c0_39] : memref<4x1x128xf32, #tpu.memory_space<vmem>>, vector<1x1x128xf32>
    %47 = vector.shape_cast %46 : vector<1x1x128xf32> to vector<1x128xf32>
    %48 = vector.broadcast %47 : vector<1x128xf32> to vector<16x128xf32>
    %49 = arith.addf %45, %48 : vector<16x128xf32>
    %cst_40 = arith.constant 0.000000e+00 : f32
    %50 = vector.broadcast %cst_40 : f32 to vector<16x128xf32>
    %51 = arith.maximumf %49, %50 : vector<16x128xf32>
    %52 = arith.truncf %51 : vector<16x128xf32> to vector<16x128xbf16>
    %c0_41 = arith.constant 0 : index
    %c0_42 = arith.constant 0 : index
    %53 = vector.load %arg9[%c0_41, %c0_42] : memref<16x128xbf16, #tpu.memory_space<vmem>>, vector<16x128xbf16>
    %54 = arith.addf %52, %53 : vector<16x128xbf16>
    %c0_43 = arith.constant 0 : index
    %c0_44 = arith.constant 0 : index
    %55 = vector.load %arg6[%c0_43, %c0_44] : memref<128x128xbf16, #tpu.memory_space<vmem>>, vector<128x128xbf16>
    %cst_45 = arith.constant dense<0.000000e+00> : vector<16x128xf32>
    %56 = tpu.matmul %54, %55, %cst_45 {dimension_numbers = #tpu.dot_dimension_numbers<[1], [0], [0], [1], [0, 0, 1, 1], [], []>} : vector<16x128xbf16>, vector<128x128xbf16>, vector<16x128xf32> -> vector<16x128xf32>
    %c0_46 = arith.constant 0 : index
    %c0_47 = arith.constant 0 : index
    %57 = vector.load %arg7[%c0_46, %c0_47] : memref<1x128xf32, #tpu.memory_space<vmem>>, vector<1x128xf32>
    %58 = vector.broadcast %57 : vector<1x128xf32> to vector<16x128xf32>
    %59 = arith.addf %56, %58 : vector<16x128xf32>
    %c0_48 = arith.constant 0 : index
    %c0_49 = arith.constant 0 : index
    %60 = vector.load %arg8[%c0_48, %c0_49] : memref<16x128xf32, #tpu.memory_space<vmem>>, vector<16x128xf32>
    tpu.vector_store %arg8[%c0_48, %c0_49], %59 {strides = array<i32>} : memref<16x128xf32, #tpu.memory_space<vmem>>, vector<16x128xf32>,
    return
  }
  func.func @transform_0(%arg0: i32) -> (i32, i32) {
    %c0_i32 = arith.constant 0 : i32
    %c0_i32_0 = arith.constant 0 : i32
    return %arg0, %c0_i32 : i32, i32
  }
  func.func @transform_1(%arg0: i32) -> (i32, i32) {
    %c0_i32 = arith.constant 0 : i32
    %c0_i32_0 = arith.constant 0 : i32
    %c0_i32_1 = arith.constant 0 : i32
    return %c0_i32, %c0_i32_0 : i32, i32
  }
  func.func @transform_2(%arg0: i32) -> (i32, i32) {
    %c0_i32 = arith.constant 0 : i32
    %c0_i32_0 = arith.constant 0 : i32
    %c0_i32_1 = arith.constant 0 : i32
    return %c0_i32, %c0_i32_0 : i32, i32
  }
  func.func @transform_3(%arg0: i32) -> (i32, i32, i32) {
    %c0_i32 = arith.constant 0 : i32
    %c0_i32_0 = arith.constant 0 : i32
    %c0_i32_1 = arith.constant 0 : i32
    %c0_i32_2 = arith.constant 0 : i32
    return %c0_i32, %c0_i32_0, %c0_i32_1 : i32, i32, i32
  }
  func.func @transform_4(%arg0: i32) -> (i32, i32, i32) {
    %c0_i32 = arith.constant 0 : i32
    %c0_i32_0 = arith.constant 0 : i32
    %c0_i32_1 = arith.constant 0 : i32
    %c0_i32_2 = arith.constant 0 : i32
    return %c0_i32, %c0_i32_0, %c0_i32_1 : i32, i32, i32
  }
  func.func @transform_5(%arg0: i32) -> (i32, i32) {
    %c0_i32 = arith.constant 0 : i32
    %c0_i32_0 = arith.constant 0 : i32
    %c0_i32_1 = arith.constant 0 : i32
    return %c0_i32, %c0_i32_0 : i32, i32
  }
  func.func @transform_6(%arg0: i32) -> (i32, i32) {
    %c0_i32 = arith.constant 0 : i32
    %c0_i32_0 = arith.constant 0 : i32
    %c0_i32_1 = arith.constant 0 : i32
    return %c0_i32, %c0_i32_0 : i32, i32
  }
  func.func @transform_7(%arg0: i32) -> (i32, i32) {
    %c0_i32 = arith.constant 0 : i32
    %c0_i32_0 = arith.constant 0 : i32
    return %arg0, %c0_i32 : i32, i32
  }
}

</mosaic_0001>

<llo_original>
// kernel: tpu_custom_call.1
$region0: #{tpu_custom_call.1}
  #allocation0 [shape = 'u32[]', space=smem, size = 0x4, offset = 0x4, fixed_abs, tag = 'smem constant byte address 0x4 - core index']
  #allocation1 [shape = 'u32[72,128]{1,0:T(1,128)}', space=vmem, size = 0x9000, scoped, tag = 'internal scratch']
  #allocation2 [shape = 'bf16[16,128]{1,0:T(8,128)(2,1)}', space=vmem, size = 0x1000, scoped, tag = 'scratch operand']
  %s0 = inlined_call_operand.hbm [shape: bf16[16,128], index: 0, kind: input, shape index: {}]
  %s1 = inlined_call_operand.hbm [shape: bf16[128,128], index: 1, kind: input, shape index: {}]
  %s2 = inlined_call_operand.vmem [shape: f32[1,128], index: 2, kind: input, shape index: {}]
  %s3 = inlined_call_operand.hbm [shape: bf16[4,128,128], index: 3, kind: input, shape index: {}]
  %s4 = inlined_call_operand.hbm [shape: f32[4,1,128], index: 4, kind: input, shape index: {}]
  %s5 = inlined_call_operand.hbm [shape: bf16[128,128], index: 5, kind: input, shape index: {}]
  %s6 = inlined_call_operand.vmem [shape: f32[1,128], index: 6, kind: input, shape index: {}]
  %s7 = inlined_call_operand.hbm [shape: f32[16,128], index: 7, kind: output, shape index: {}]
  %s8 = sld [smem:[#allocation0]]
  $region58: #{tpu_custom_call.1} parent=0
    _
  %s10 = ssub.s32 1, %s8
  %s11 = scalar_select 0, %s10, %s8
  $region1: #{tpu_custom_call.1} parent=0
    #allocation3 [shape = 'u8[4096]{0}', space=vmem, size = 0x1000, scoped, tag = 'input window, operand 0, single buffered']
    #allocation4 [shape = 's32[1]{0}', space=sflag, size = 0x4, scoped, tag = 'scoped memory for tpu_custom_call.1']
    #allocation5 [shape = 's32[1]{0}', space=sflag, size = 0x4, scoped, tag = 'scoped memory for tpu_custom_call.1']
    #allocation6 [shape = 'u8[32768]{0}', space=vmem, size = 0x8000, scoped, tag = 'input window, operand 1, single buffered']
    #allocation7 [shape = 's32[1]{0}', space=sflag, size = 0x4, scoped, tag = 'scoped memory for tpu_custom_call.1']
    #allocation8 [shape = 'u8[131072]{0}', space=vmem, size = 0x20000, scoped, tag = 'input window, operand 3, single buffered']
    #allocation9 [shape = 'u8[2048]{0}', space=vmem, size = 0x800, scoped, tag = 'input window, operand 4, single buffered']
    #allocation10 [shape = 's32[1]{0}', space=sflag, size = 0x4, scoped, tag = 'scoped memory for tpu_custom_call.1']
    #allocation11 [shape = 'u8[32768]{0}', space=vmem, size = 0x8000, scoped, tag = 'input window, operand 5, single buffered']
    #allocation12 [shape = 'u8[8192]{0}', space=vmem, size = 0x2000, scoped, tag = 'output window, operand 0, single buffered']
    %12 = vsyncpa [#allocation4], 0
    %13 = vsyncpa [#allocation7], 0
    %14 = vsyncpa [#allocation10], 0
    %15 = vsyncpa [#allocation5], 0
    // Predicated region
    $region2: #{tpu_custom_call.1} parent=1 // pred_check
      _
    $region3: #{tpu_custom_call.1} parent=1 // pred_check_branch
      %17 = sbr.rel (0) target = $region5
    $region4: #{tpu_custom_call.1} parent=1 // pred_region
      %19 = vsyncadd [#allocation4], 0
      %s20 = sshll.u32 %s0, 4
      %s21 = int_to_ptr.hbm [resolvable:$true] %s20
      %s22 = sshll.u32 [#allocation3], 4
      %s23 = int_to_ptr.vmem [resolvable:$true] %s22
      %28 = dma.hbm_to_vmem [thread:$0]  %s21, 128, %s23, [#allocation4], 64, 64, 4
    $region5: #{tpu_custom_call.1} parent=1 // pred_fallthru
      _
    // Predicated region
    $region6: #{tpu_custom_call.1} parent=1 // pred_check
      _
    $region7: #{tpu_custom_call.1} parent=1 // pred_check_branch
      %30 = sbr.rel (0) target = $region9
    $region8: #{tpu_custom_call.1} parent=1 // pred_region
      %32 = vsyncadd [#allocation7], 0
      %s33 = sshll.u32 %s1, 4
      %s34 = int_to_ptr.hbm [resolvable:$true] %s33
      %s35 = sshll.u32 [#allocation6], 4
      %s36 = int_to_ptr.vmem [resolvable:$true] %s35
      %41 = dma.hbm_to_vmem [thread:$0]  %s34, 1024, %s36, [#allocation7], 64, 64, 4
    $region9: #{tpu_custom_call.1} parent=1 // pred_fallthru
      _
    // Predicated region
    $region10: #{tpu_custom_call.1} parent=1 // pred_check
      _
    $region11: #{tpu_custom_call.1} parent=1 // pred_check_branch
      %43 = sbr.rel (0) target = $region13
    $region12: #{tpu_custom_call.1} parent=1 // pred_region
      _
    $region13: #{tpu_custom_call.1} parent=1 // pred_fallthru
      _
    // Predicated region
    $region14: #{tpu_custom_call.1} parent=1 // pred_check
      _
    $region15: #{tpu_custom_call.1} parent=1 // pred_check_branch
      %45 = sbr.rel (0) target = $region17
    $region16: #{tpu_custom_call.1} parent=1 // pred_region
      %47 = vsyncadd [#allocation7], 0
      %s48 = sshll.u32 %s3, 4
      %s49 = int_to_ptr.hbm [resolvable:$true] %s48
      %s50 = sshll.u32 [#allocation8], 4
      %s51 = int_to_ptr.vmem [resolvable:$true] %s50
      %56 = dma.hbm_to_vmem [thread:$0]  %s49, 4096, %s51, [#allocation7], 64, 64, 4
    $region17: #{tpu_custom_call.1} parent=1 // pred_fallthru
      _
    // Predicated region
    $region18: #{tpu_custom_call.1} parent=1 // pred_check
      _
    $region19: #{tpu_custom_call.1} parent=1 // pred_check_branch
      %58 = sbr.rel (0) target = $region21
    $region20: #{tpu_custom_call.1} parent=1 // pred_region
      %60 = vsyncadd [#allocation10], 0
      %s61 = sshll.u32 %s4, 4
      %s62 = int_to_ptr.hbm [resolvable:$true] %s61
      %s63 = sshll.u32 [#allocation9], 4
      %s64 = int_to_ptr.vmem [resolvable:$true] %s63
      %69 = dma.hbm_to_vmem [thread:$0]  %s62, 64, %s64, [#allocation10], 16, 16, 1
    $region21: #{tpu_custom_call.1} parent=1 // pred_fallthru
      _
    // Predicated region
    $region22: #{tpu_custom_call.1} parent=1 // pred_check
      _
    $region23: #{tpu_custom_call.1} parent=1 // pred_check_branch
      %71 = sbr.rel (0) target = $region25
    $region24: #{tpu_custom_call.1} parent=1 // pred_region
      %73 = vsyncadd [#allocation10], 0
      %s74 = sshll.u32 %s5, 4
      %s75 = int_to_ptr.hbm [resolvable:$true] %s74
      %s76 = sshll.u32 [#allocation11], 4
      %s77 = int_to_ptr.vmem [resolvable:$true] %s76
      %82 = dma.hbm_to_vmem [thread:$0]  %s75, 1024, %s77, [#allocation10], 64, 64, 4
    $region25: #{tpu_custom_call.1} parent=1 // pred_fallthru
      _
    // Predicated region
    $region26: #{tpu_custom_call.1} parent=1 // pred_check
      _
    $region27: #{tpu_custom_call.1} parent=1 // pred_check_branch
      %84 = sbr.rel (0) target = $region29
    $region28: #{tpu_custom_call.1} parent=1 // pred_region
      _
    $region29: #{tpu_custom_call.1} parent=1 // pred_fallthru
      _
    // Predicated region
    $region30: #{tpu_custom_call.1} parent=1 // pred_check
      _
    $region31: #{tpu_custom_call.1} parent=1 // pred_check_branch
      %86 = sbr.rel (0) target = $region33
    $region32: #{tpu_custom_call.1} parent=1 // pred_region
      %88 = dma.done [#allocation4], 128
    $region33: #{tpu_custom_call.1} parent=1 // pred_fallthru
      _
    // Predicated region
    $region34: #{tpu_custom_call.1} parent=1 // pred_check
      _
    $region35: #{tpu_custom_call.1} parent=1 // pred_check_branch
      %90 = sbr.rel (0) target = $region37
    $region36: #{tpu_custom_call.1} parent=1 // pred_region
      %92 = dma.done [#allocation7], 1024
    $region37: #{tpu_custom_call.1} parent=1 // pred_fallthru
      _
    // Predicated region
    $region38: #{tpu_custom_call.1} parent=1 // pred_check
      _
    $region39: #{tpu_custom_call.1} parent=1 // pred_check_branch
      %94 = sbr.rel (0) target = $region41
    $region40: #{tpu_custom_call.1} parent=1 // pred_region
      %96 = dma.done [#allocation7], 4096
    $region41: #{tpu_custom_call.1} parent=1 // pred_fallthru
      _
    // Predicated region
    $region42: #{tpu_custom_call.1} parent=1 // pred_check
      _
    $region43: #{tpu_custom_call.1} parent=1 // pred_check_branch
      %98 = sbr.rel (0) target = $region45
    $region44: #{tpu_custom_call.1} parent=1 // pred_region
      %100 = dma.done [#allocation10], 64
    $region45: #{tpu_custom_call.1} parent=1 // pred_fallthru
      _
    // Predicated region
    $region46: #{tpu_custom_call.1} parent=1 // pred_check
      _
    $region47: #{tpu_custom_call.1} parent=1 // pred_check_branch
      %102 = sbr.rel (0) target = $region49
    $region48: #{tpu_custom_call.1} parent=1 // pred_region
      %104 = dma.done [#allocation10], 1024
    $region49: #{tpu_custom_call.1} parent=1 // pred_fallthru
      _
    %v105 = vld [vmem:[#allocation3] sm:$0xf]
    %v106 = vld [vmem:[#allocation3 + $0x4] sm:$0xf]
    %v107 = vld [vmem:[#allocation6] sm:$0xf]
    %v108 = vld [vmem:[#allocation6 + $0x4] sm:$0xf]
    %v109 = vld [vmem:[#allocation6 + $0x8] sm:$0xf]
    %v110 = vld [vmem:[#allocation6 + $0xc] sm:$0xf]
    %v111 = vld [vmem:[#allocation6 + $0x10] sm:$0xf]
    %v112 = vld [vmem:[#allocation6 + $0x14] sm:$0xf]
    %v113 = vld [vmem:[#allocation6 + $0x18] sm:$0xf]
    %v114 = vld [vmem:[#allocation6 + $0x1c] sm:$0xf]
    %v115 = vld [vmem:[#allocation6 + $0x20] sm:$0xf]
    %v116 = vld [vmem:[#allocation6 + $0x24] sm:$0xf]
    %v117 = vld [vmem:[#allocation6 + $0x28] sm:$0xf]
    %v118 = vld [vmem:[#allocation6 + $0x2c] sm:$0xf]
    %v119 = vld [vmem:[#allocation6 + $0x30] sm:$0xf]
    %v120 = vld [vmem:[#allocation6 + $0x34] sm:$0xf]
    %v121 = vld [vmem:[#allocation6 + $0x38] sm:$0xf]
    %v122 = vld [vmem:[#allocation6 + $0x3c] sm:$0xf]
    %v123 = vld [vmem:[%s2] sm:$0x1]
    %v125 = vperm.slane %v123, 0
    %v129 = vunpack.c.l.b16 %v105
    %v130 = vunpack.c.l.b16 %v106
    %v131 = vpack.c.b16 %v130, %v129
    %v149 = vunpack.c.l.b16 %v107
    %v150 = vunpack.c.l.b16 %v108
    %v151 = vunpack.c.l.b16 %v109
    %v152 = vunpack.c.l.b16 %v110
    %v153 = vunpack.c.l.b16 %v111
    %v154 = vunpack.c.l.b16 %v112
    %v155 = vunpack.c.l.b16 %v113
    %v156 = vunpack.c.l.b16 %v114
    %v157 = vunpack.c.l.b16 %v115
    %v158 = vunpack.c.l.b16 %v116
    %v159 = vunpack.c.l.b16 %v117
    %v160 = vunpack.c.l.b16 %v118
    %v161 = vunpack.c.l.b16 %v119
    %v162 = vunpack.c.l.b16 %v120
    %v163 = vunpack.c.l.b16 %v121
    %v164 = vunpack.c.l.b16 %v122
    %v165 = vpack.c.b16 %v150, %v149
    %v166 = vpack.c.b16 %v152, %v151
    %v167 = vpack.c.b16 %v154, %v153
    %v168 = vpack.c.b16 %v156, %v155
    %v169 = vpack.c.b16 %v158, %v157
    %v170 = vpack.c.b16 %v160, %v159
    %v171 = vpack.c.b16 %v162, %v161
    %v172 = vpack.c.b16 %v164, %v163
    %181 = vmatpush.bf16.msra.mxu0 %v172
    %182 = vmatpush.bf16.msra.mxu0 %v171
    %183 = vmatpush.bf16.msra.mxu0 %v170
    %184 = vmatpush.bf16.msra.mxu0 %v169
    %185 = vmatpush.bf16.msra.mxu0 %v168
    %186 = vmatpush.bf16.msra.mxu0 %v167
    %187 = vmatpush.bf16.msra.mxu0 %v166
    %188 = vmatpush.bf16.msra.mxu0 %v165
    %189 = vmatmul.bf16.gmra.mxu0 %v131
    %v190 = vpop.f32.mrf.mxu0
    %v191 = vadd.f32 %v125, %v190
    %v192 = vpop.f32.mrf.mxu0
    %v193 = vadd.f32 %v125, %v192
    %194 = vdwg.mxu0
    %v195 = vmax.f32 %v191, 0.0
    %v196 = vmax.f32 %v193, 0.0
    %v197 = vpack.c.bf16 %v195, %v195
    %v198 = vpack.c.bf16 %v196, %v196
    %199 = vst [vmem:[#allocation2] sm:$0xf] %v197
    %200 = vst [vmem:[#allocation2 + $0x4] sm:$0xf] %v198
    %v201 = vld [vmem:[#allocation8] sm:$0xf]
    %v202 = vld [vmem:[#allocation8 + $0x4] sm:$0xf]
    %v203 = vld [vmem:[#allocation8 + $0x8] sm:$0xf]
    %v204 = vld [vmem:[#allocation8 + $0xc] sm:$0xf]
    %v205 = vld [vmem:[#allocation8 + $0x10] sm:$0xf]
    %v206 = vld [vmem:[#allocation8 + $0x14] sm:$0xf]
    %v207 = vld [vmem:[#allocation8 + $0x18] sm:$0xf]
    %v208 = vld [vmem:[#allocation8 + $0x1c] sm:$0xf]
    %v209 = vld [vmem:[#allocation8 + $0x20] sm:$0xf]
    %v210 = vld [vmem:[#allocation8 + $0x24] sm:$0xf]
    %v211 = vld [vmem:[#allocation8 + $0x28] sm:$0xf]
    %v212 = vld [vmem:[#allocation8 + $0x2c] sm:$0xf]
    %v213 = vld [vmem:[#allocation8 + $0x30] sm:$0xf]
    %v214 = vld [vmem:[#allocation8 + $0x34] sm:$0xf]
    %v215 = vld [vmem:[#allocation8 + $0x38] sm:$0xf]
    %v216 = vld [vmem:[#allocation8 + $0x3c] sm:$0xf]
    %v217 = vld [vmem:[#allocation9] sm:$0x1]
    %v219 = vperm.slane %v217, 0
    %v223 = vunpack.c.l.b16 %v197
    %v224 = vunpack.c.l.b16 %v198
    %v225 = vpack.c.b16 %v224, %v223
    %v243 = vunpack.c.l.b16 %v201
    %v244 = vunpack.c.l.b16 %v202
    %v245 = vunpack.c.l.b16 %v203
    %v246 = vunpack.c.l.b16 %v204
    %v247 = vunpack.c.l.b16 %v205
    %v248 = vunpack.c.l.b16 %v206
    %v249 = vunpack.c.l.b16 %v207
    %v250 = vunpack.c.l.b16 %v208
    %v251 = vunpack.c.l.b16 %v209
    %v252 = vunpack.c.l.b16 %v210
    %v253 = vunpack.c.l.b16 %v211
    %v254 = vunpack.c.l.b16 %v212
    %v255 = vunpack.c.l.b16 %v213
    %v256 = vunpack.c.l.b16 %v214
    %v257 = vunpack.c.l.b16 %v215
    %v258 = vunpack.c.l.b16 %v216
    %v259 = vpack.c.b16 %v244, %v243
    %v260 = vpack.c.b16 %v246, %v245
    %v261 = vpack.c.b16 %v248, %v247
    %v262 = vpack.c.b16 %v250, %v249
    %v263 = vpack.c.b16 %v252, %v251
    %v264 = vpack.c.b16 %v254, %v253
    %v265 = vpack.c.b16 %v256, %v255
    %v266 = vpack.c.b16 %v258, %v257
    %275 = vmatpush.bf16.msra.mxu0 %v266
    %276 = vmatpush.bf16.msra.mxu0 %v265
    %277 = vmatpush.bf16.msra.mxu0 %v264
    %278 = vmatpush.bf16.msra.mxu0 %v263
    %279 = vmatpush.bf16.msra.mxu0 %v262
    %280 = vmatpush.bf16.msra.mxu0 %v261
    %281 = vmatpush.bf16.msra.mxu0 %v260
    %282 = vmatpush.bf16.msra.mxu0 %v259
    %283 = vmatmul.bf16.gmra.mxu0 %v225
    %v284 = vpop.f32.mrf.mxu0
    %v285 = vadd.f32 %v219, %v284
    %v286 = vpop.f32.mrf.mxu0
    %v287 = vadd.f32 %v219, %v286
    %288 = vdwg.mxu0
    %v289 = vmax.f32 %v285, 0.0
    %v290 = vmax.f32 %v287, 0.0
    %v291 = vpack.c.bf16 %v290, %v289
    %s292 = scalar_lea.vmem [#allocation8], 64
    %v293 = vld [vmem:[%s292] sm:$0xf]
    %v294 = vld [vmem:[%s292 + $0x4] sm:$0xf]
    %v295 = vld [vmem:[%s292 + $0x8] sm:$0xf]
    %v296 = vld [vmem:[%s292 + $0xc] sm:$0xf]
    %v297 = vld [vmem:[%s292 + $0x10] sm:$0xf]
    %v298 = vld [vmem:[%s292 + $0x14] sm:$0xf]
    %v299 = vld [vmem:[%s292 + $0x18] sm:$0xf]
    %v300 = vld [vmem:[%s292 + $0x1c] sm:$0xf]
    %v301 = vld [vmem:[%s292 + $0x20] sm:$0xf]
    %v302 = vld [vmem:[%s292 + $0x24] sm:$0xf]
    %v303 = vld [vmem:[%s292 + $0x28] sm:$0xf]
    %v304 = vld [vmem:[%s292 + $0x2c] sm:$0xf]
    %v305 = vld [vmem:[%s292 + $0x30] sm:$0xf]
    %v306 = vld [vmem:[%s292 + $0x34] sm:$0xf]
    %v307 = vld [vmem:[%s292 + $0x38] sm:$0xf]
    %v308 = vld [vmem:[%s292 + $0x3c] sm:$0xf]
    %s309 = scalar_lea.vmem [#allocation9], 1
    %v310 = vld [vmem:[%s309] sm:$0x1]
    %v312 = vperm.slane %v310, 0
    %v330 = vunpack.c.l.b16 %v293
    %v331 = vunpack.c.l.b16 %v294
    %v332 = vunpack.c.l.b16 %v295
    %v333 = vunpack.c.l.b16 %v296
    %v334 = vunpack.c.l.b16 %v297
    %v335 = vunpack.c.l.b16 %v298
    %v336 = vunpack.c.l.b16 %v299
    %v337 = vunpack.c.l.b16 %v300
    %v338 = vunpack.c.l.b16 %v301
    %v339 = vunpack.c.l.b16 %v302
    %v340 = vunpack.c.l.b16 %v303
    %v341 = vunpack.c.l.b16 %v304
    %v342 = vunpack.c.l.b16 %v305
    %v343 = vunpack.c.l.b16 %v306
    %v344 = vunpack.c.l.b16 %v307
    %v345 = vunpack.c.l.b16 %v308
    %v346 = vpack.c.b16 %v331, %v330
    %v347 = vpack.c.b16 %v333, %v332
    %v348 = vpack.c.b16 %v335, %v334
    %v349 = vpack.c.b16 %v337, %v336
    %v350 = vpack.c.b16 %v339, %v338
    %v351 = vpack.c.b16 %v341, %v340
    %v352 = vpack.c.b16 %v343, %v342
    %v353 = vpack.c.b16 %v345, %v344
    %362 = vmatpush.bf16.msra.mxu0 %v353
    %363 = vmatpush.bf16.msra.mxu0 %v352
    %364 = vmatpush.bf16.msra.mxu0 %v351
    %365 = vmatpush.bf16.msra.mxu0 %v350
    %366 = vmatpush.bf16.msra.mxu0 %v349
    %367 = vmatpush.bf16.msra.mxu0 %v348
    %368 = vmatpush.bf16.msra.mxu0 %v347
    %369 = vmatpush.bf16.msra.mxu0 %v346
    %370 = vmatmul.bf16.gmra.mxu0 %v291
    %v371 = vpop.f32.mrf.mxu0
    %v372 = vadd.f32 %v312, %v371
    %v373 = vpop.f32.mrf.mxu0
    %v374 = vadd.f32 %v312, %v373
    %375 = vdwg.mxu0
    %v376 = vmax.f32 %v372, 0.0
    %v377 = vmax.f32 %v374, 0.0
    %v378 = vpack.c.bf16 %v376, %v376
    %v379 = vpack.c.bf16 %v377, %v377
    %v380 = vld [vmem:[#allocation2] sm:$0xf]
    %v381 = vld [vmem:[#allocation2 + $0x4] sm:$0xf]
    %v382 = vunpack.c.l.bf16 %v378
    %v383 = vunpack.c.l.bf16 %v379
    %v384 = vunpack.c.l.bf16 %v380
    %v385 = vunpack.c.l.bf16 %v381
    %v386 = vadd.f32 %v382, %v384
    %v387 = vadd.f32 %v383, %v385
    %v388 = vpack.c.bf16 %v386, %v386
    %v389 = vpack.c.bf16 %v387, %v387
    %390 = vst [vmem:[#allocation2] sm:$0xf] %v388
    %391 = vst [vmem:[#allocation2 + $0x4] sm:$0xf] %v389
    %s392 = scalar_lea.vmem [#allocation8], 128
    %v393 = vld [vmem:[%s392] sm:$0xf]
    %v394 = vld [vmem:[%s392 + $0x4] sm:$0xf]
    %v395 = vld [vmem:[%s392 + $0x8] sm:$0xf]
    %v396 = vld [vmem:[%s392 + $0xc] sm:$0xf]
    %v397 = vld [vmem:[%s392 + $0x10] sm:$0xf]
    %v398 = vld [vmem:[%s392 + $0x14] sm:$0xf]
    %v399 = vld [vmem:[%s392 + $0x18] sm:$0xf]
    %v400 = vld [vmem:[%s392 + $0x1c] sm:$0xf]
    %v401 = vld [vmem:[%s392 + $0x20] sm:$0xf]
    %v402 = vld [vmem:[%s392 + $0x24] sm:$0xf]
    %v403 = vld [vmem:[%s392 + $0x28] sm:$0xf]
    %v404 = vld [vmem:[%s392 + $0x2c] sm:$0xf]
    %v405 = vld [vmem:[%s392 + $0x30] sm:$0xf]
    %v406 = vld [vmem:[%s392 + $0x34] sm:$0xf]
    %v407 = vld [vmem:[%s392 + $0x38] sm:$0xf]
    %v408 = vld [vmem:[%s392 + $0x3c] sm:$0xf]
    %s409 = scalar_lea.vmem [#allocation9], 2
    %v410 = vld [vmem:[%s409] sm:$0x1]
    %v412 = vperm.slane %v410, 0
    %v416 = vunpack.c.l.b16 %v388
    %v417 = vunpack.c.l.b16 %v389
    %v418 = vpack.c.b16 %v417, %v416
    %v436 = vunpack.c.l.b16 %v393
    %v437 = vunpack.c.l.b16 %v394
    %v438 = vunpack.c.l.b16 %v395
    %v439 = vunpack.c.l.b16 %v396
    %v440 = vunpack.c.l.b16 %v397
    %v441 = vunpack.c.l.b16 %v398
    %v442 = vunpack.c.l.b16 %v399
    %v443 = vunpack.c.l.b16 %v400
    %v444 = vunpack.c.l.b16 %v401
    %v445 = vunpack.c.l.b16 %v402
    %v446 = vunpack.c.l.b16 %v403
    %v447 = vunpack.c.l.b16 %v404
    %v448 = vunpack.c.l.b16 %v405
    %v449 = vunpack.c.l.b16 %v406
    %v450 = vunpack.c.l.b16 %v407
    %v451 = vunpack.c.l.b16 %v408
    %v452 = vpack.c.b16 %v437, %v436
    %v453 = vpack.c.b16 %v439, %v438
    %v454 = vpack.c.b16 %v441, %v440
    %v455 = vpack.c.b16 %v443, %v442
    %v456 = vpack.c.b16 %v445, %v444
    %v457 = vpack.c.b16 %v447, %v446
    %v458 = vpack.c.b16 %v449, %v448
    %v459 = vpack.c.b16 %v451, %v450
    %468 = vmatpush.bf16.msra.mxu0 %v459
    %469 = vmatpush.bf16.msra.mxu0 %v458
    %470 = vmatpush.bf16.msra.mxu0 %v457
    %471 = vmatpush.bf16.msra.mxu0 %v456
    %472 = vmatpush.bf16.msra.mxu0 %v455
    %473 = vmatpush.bf16.msra.mxu0 %v454
    %474 = vmatpush.bf16.msra.mxu0 %v453
    %475 = vmatpush.bf16.msra.mxu0 %v452
    %476 = vmatmul.bf16.gmra.mxu0 %v418
    %v477 = vpop.f32.mrf.mxu0
    %v478 = vadd.f32 %v412, %v477
    %v479 = vpop.f32.mrf.mxu0
    %v480 = vadd.f32 %v412, %v479
    %481 = vdwg.mxu0
    %v482 = vmax.f32 %v478, 0.0
    %v483 = vmax.f32 %v480, 0.0
    %v484 = vpack.c.bf16 %v483, %v482
    %s485 = scalar_lea.vmem [#allocation8], 192
    %v486 = vld [vmem:[%s485] sm:$0xf]
    %v487 = vld [vmem:[%s485 + $0x4] sm:$0xf]
    %v488 = vld [vmem:[%s485 + $0x8] sm:$0xf]
    %v489 = vld [vmem:[%s485 + $0xc] sm:$0xf]
    %v490 = vld [vmem:[%s485 + $0x10] sm:$0xf]
    %v491 = vld [vmem:[%s485 + $0x14] sm:$0xf]
    %v492 = vld [vmem:[%s485 + $0x18] sm:$0xf]
    %v493 = vld [vmem:[%s485 + $0x1c] sm:$0xf]
    %v494 = vld [vmem:[%s485 + $0x20] sm:$0xf]
    %v495 = vld [vmem:[%s485 + $0x24] sm:$0xf]
    %v496 = vld [vmem:[%s485 + $0x28] sm:$0xf]
    %v497 = vld [vmem:[%s485 + $0x2c] sm:$0xf]
    %v498 = vld [vmem:[%s485 + $0x30] sm:$0xf]
    %v499 = vld [vmem:[%s485 + $0x34] sm:$0xf]
    %v500 = vld [vmem:[%s485 + $0x38] sm:$0xf]
    %v501 = vld [vmem:[%s485 + $0x3c] sm:$0xf]
    %s502 = scalar_lea.vmem [#allocation9], 3
    %v503 = vld [vmem:[%s502] sm:$0x1]
    %v505 = vperm.slane %v503, 0
    %v523 = vunpack.c.l.b16 %v486
    %v524 = vunpack.c.l.b16 %v487
    %v525 = vunpack.c.l.b16 %v488
    %v526 = vunpack.c.l.b16 %v489
    %v527 = vunpack.c.l.b16 %v490
    %v528 = vunpack.c.l.b16 %v491
    %v529 = vunpack.c.l.b16 %v492
    %v530 = vunpack.c.l.b16 %v493
    %v531 = vunpack.c.l.b16 %v494
    %v532 = vunpack.c.l.b16 %v495
    %v533 = vunpack.c.l.b16 %v496
    %v534 = vunpack.c.l.b16 %v497
    %v535 = vunpack.c.l.b16 %v498
    %v536 = vunpack.c.l.b16 %v499
    %v537 = vunpack.c.l.b16 %v500
    %v538 = vunpack.c.l.b16 %v501
    %v539 = vpack.c.b16 %v524, %v523
    %v540 = vpack.c.b16 %v526, %v525
    %v541 = vpack.c.b16 %v528, %v527
    %v542 = vpack.c.b16 %v530, %v529
    %v543 = vpack.c.b16 %v532, %v531
    %v544 = vpack.c.b16 %v534, %v533
    %v545 = vpack.c.b16 %v536, %v535
    %v546 = vpack.c.b16 %v538, %v537
    %555 = vmatpush.bf16.msra.mxu0 %v546
    %556 = vmatpush.bf16.msra.mxu0 %v545
    %557 = vmatpush.bf16.msra.mxu0 %v544
    %558 = vmatpush.bf16.msra.mxu0 %v543
    %559 = vmatpush.bf16.msra.mxu0 %v542
    %560 = vmatpush.bf16.msra.mxu0 %v541
    %561 = vmatpush.bf16.msra.mxu0 %v540
    %562 = vmatpush.bf16.msra.mxu0 %v539
    %563 = vmatmul.bf16.gmra.mxu0 %v484
    %v564 = vpop.f32.mrf.mxu0
    %v565 = vadd.f32 %v505, %v564
    %v566 = vpop.f32.mrf.mxu0
    %v567 = vadd.f32 %v505, %v566
    %568 = vdwg.mxu0
    %v569 = vmax.f32 %v565, 0.0
    %v570 = vmax.f32 %v567, 0.0
    %v571 = vpack.c.bf16 %v569, %v569
    %v572 = vpack.c.bf16 %v570, %v570
    %v573 = vld [vmem:[#allocation2] sm:$0xf]
    %v574 = vld [vmem:[#allocation2 + $0x4] sm:$0xf]
    %v575 = vunpack.c.l.bf16 %v571
    %v576 = vunpack.c.l.bf16 %v572
    %v577 = vunpack.c.l.bf16 %v573
    %v578 = vunpack.c.l.bf16 %v574
    %v579 = vadd.f32 %v575, %v577
    %v580 = vadd.f32 %v576, %v578
    %v581 = vpack.c.bf16 %v580, %v579
    %v582 = vld [vmem:[#allocation11] sm:$0xf]
    %v583 = vld [vmem:[#allocation11 + $0x4] sm:$0xf]
    %v584 = vld [vmem:[#allocation11 + $0x8] sm:$0xf]
    %v585 = vld [vmem:[#allocation11 + $0xc] sm:$0xf]
    %v586 = vld [vmem:[#allocation11 + $0x10] sm:$0xf]
    %v587 = vld [vmem:[#allocation11 + $0x14] sm:$0xf]
    %v588 = vld [vmem:[#allocation11 + $0x18] sm:$0xf]
    %v589 = vld [vmem:[#allocation11 + $0x1c] sm:$0xf]
    %v590 = vld [vmem:[#allocation11 + $0x20] sm:$0xf]
    %v591 = vld [vmem:[#allocation11 + $0x24] sm:$0xf]
    %v592 = vld [vmem:[#allocation11 + $0x28] sm:$0xf]
    %v593 = vld [vmem:[#allocation11 + $0x2c] sm:$0xf]
    %v594 = vld [vmem:[#allocation11 + $0x30] sm:$0xf]
    %v595 = vld [vmem:[#allocation11 + $0x34] sm:$0xf]
    %v596 = vld [vmem:[#allocation11 + $0x38] sm:$0xf]
    %v597 = vld [vmem:[#allocation11 + $0x3c] sm:$0xf]
    %v598 = vld [vmem:[%s6] sm:$0x1]
    %v600 = vperm.slane %v598, 0
    %v618 = vunpack.c.l.b16 %v582
    %v619 = vunpack.c.l.b16 %v583
    %v620 = vunpack.c.l.b16 %v584
    %v621 = vunpack.c.l.b16 %v585
    %v622 = vunpack.c.l.b16 %v586
    %v623 = vunpack.c.l.b16 %v587
    %v624 = vunpack.c.l.b16 %v588
    %v625 = vunpack.c.l.b16 %v589
    %v626 = vunpack.c.l.b16 %v590
    %v627 = vunpack.c.l.b16 %v591
    %v628 = vunpack.c.l.b16 %v592
    %v629 = vunpack.c.l.b16 %v593
    %v630 = vunpack.c.l.b16 %v594
    %v631 = vunpack.c.l.b16 %v595
    %v632 = vunpack.c.l.b16 %v596
    %v633 = vunpack.c.l.b16 %v597
    %v634 = vpack.c.b16 %v619, %v618
    %v635 = vpack.c.b16 %v621, %v620
    %v636 = vpack.c.b16 %v623, %v622
    %v637 = vpack.c.b16 %v625, %v624
    %v638 = vpack.c.b16 %v627, %v626
    %v639 = vpack.c.b16 %v629, %v628
    %v640 = vpack.c.b16 %v631, %v630
    %v641 = vpack.c.b16 %v633, %v632
    %650 = vmatpush.bf16.msra.mxu0 %v641
    %651 = vmatpush.bf16.msra.mxu0 %v640
    %652 = vmatpush.bf16.msra.mxu0 %v639
    %653 = vmatpush.bf16.msra.mxu0 %v638
    %654 = vmatpush.bf16.msra.mxu0 %v637
    %655 = vmatpush.bf16.msra.mxu0 %v636
    %656 = vmatpush.bf16.msra.mxu0 %v635
    %657 = vmatpush.bf16.msra.mxu0 %v634
    %658 = vmatmul.bf16.gmra.mxu0 %v581
    %v659 = vpop.f32.mrf.mxu0
    %v660 = vadd.f32 %v600, %v659
    %v661 = vpop.f32.mrf.mxu0
    %v662 = vadd.f32 %v600, %v661
    %663 = vdwg.mxu0
    %664 = vst [vmem:[#allocation12] sm:$0xff] %v660
    %665 = vst [vmem:[#allocation12 + $0x8] sm:$0xff] %v662
    // Predicated region
    $region50: #{tpu_custom_call.1} parent=1 // pred_check
      _
    $region51: #{tpu_custom_call.1} parent=1 // pred_check_branch
      %667 = sbr.rel (0) target = $region53
    $region52: #{tpu_custom_call.1} parent=1 // pred_region
      %669 = vsyncadd [#allocation5], 0
      %s670 = sshll.u32 [#allocation12], 4
      %s671 = int_to_ptr.vmem [resolvable:$true] %s670
      %s672 = sshll.u32 %s7, 4
      %s673 = int_to_ptr.hbm [resolvable:$true] %s672
      %678 = dma.vmem_to_hbm [thread:$0]  %s671, 256, %s673, [#allocation5], 128, 128, 8
    $region53: #{tpu_custom_call.1} parent=1 // pred_fallthru
      _
    // Predicated region
    $region54: #{tpu_custom_call.1} parent=1 // pred_check
      _
    $region55: #{tpu_custom_call.1} parent=1 // pred_check_branch
      %680 = sbr.rel (0) target = $region57
    $region56: #{tpu_custom_call.1} parent=1 // pred_region
      %682 = dma.done [#allocation5], 256
    $region57: #{tpu_custom_call.1} parent=1 // pred_fallthru
      _
    %683 = vsyncpa [#allocation4], 1
    %684 = vsyncpa [#allocation7], 1
    %685 = vsyncpa [#allocation10], 1
    %686 = vsyncpa [#allocation5], 1

</llo_original>
